<compile_context>
chip_gen: v5e
topology: v5e:2x2
jax: 0.10.0
libtpu: 0.0.40
codegen_flags: <defaults>
</compile_context>

<pallas_src>
import jax
import jax.numpy as jnp
from jax.experimental import pallas as pl
from jax.experimental.pallas import tpu as pltpu


# ----------------------------- kernels --------------------------------------


def _pad_kernel(x_ref, o_ref):
    """Zero-pad the feature (lane) axis; single lane-dense full-tile store."""
    f = x_ref.shape[-1]          # static
    t = o_ref.shape[-1]          # static
    zeros = jnp.zeros((x_ref.shape[0], t - f), dtype=o_ref.dtype)
    o_ref[...] = jnp.concatenate([x_ref[...], zeros], axis=-1)


def _copy_kernel(x_ref, o_ref):
    """Plain full-tile copy (truncate path with a narrowed input BlockSpec)."""
    o_ref[...] = x_ref[...]


def _trunc_kernel(x_ref, o_ref):
    """Truncate in vregs (used when target_dim is not lane-aligned)."""
    t = o_ref.shape[-1]
    o_ref[...] = x_ref[:, :t]


# ----------------------------- wrapper ---------------------------------------


def _sublane_packing(dtype) -> int:
    """Rows per vreg sublane group for this dtype (8 f32 / 16 bf16 / 32 int8)."""
    return {4: 8, 2: 16, 1: 32}.get(jnp.dtype(dtype).itemsize, 8)


def _pick_tile_n(n: int, in_cols: int, out_cols: int, dtype,
                 vmem_budget_bytes: int = 8 * 1024 * 1024) -> int:
    """Largest row tile s.t. double-buffered in+out tiles fit the VMEM budget.

    Budget (8 MiB) is conservative so the same tile works on v7x (64 MiB
    physical / 32 MiB scoped default) as well as v5e/v6e (128 MiB).
    """
    packing = _sublane_packing(dtype)
    itemsize = jnp.dtype(dtype).itemsize
    bytes_per_row = (in_cols + out_cols) * itemsize
    max_rows = max(packing, vmem_budget_bytes // (2 * bytes_per_row))
    tile = min(n, 2048, max_rows)
    if tile >= n:
        return n                      # whole array in one block: always legal
    # Partial-N blocks must be a multiple of the sublane packing ((8,128) rule).
    tile = max(packing, (tile // packing) * packing)
    return min(tile, n)


def vector_pad(x: jax.Array, target_dim: int) -> jax.Array:
    """Pallas implementation of VectorPad.forward for 2-D inputs (N, F)."""
    n, f = x.shape

    if f == target_dim:
        # Identity: skip the kernel entirely (no HBM round-trip).
        return x

    if f < target_dim:
        kernel = _pad_kernel
        in_block_cols = f                     # full input last dim -> legal
    else:
        if target_dim % 128 == 0:
            # Lane-aligned: only DMA the needed leading columns from HBM.
            kernel = _copy_kernel
            in_block_cols = target_dim
        else:
            # Not lane-aligned: full-row blocks, slice in vregs.
            kernel = _trunc_kernel
            in_block_cols = f

    tile_n = _pick_tile_n(n, in_block_cols, target_dim, x.dtype)
    grid = (pl.cdiv(n, tile_n),)

    return pl.pallas_call(
        kernel,
        out_shape=jax.ShapeDtypeStruct((n, target_dim), x.dtype),
        grid=grid,
        in_specs=[pl.BlockSpec((tile_n, in_block_cols), lambda i: (i, 0))],
        out_specs=pl.BlockSpec((tile_n, target_dim), lambda i: (i, 0)),
        compiler_params=pltpu.CompilerParams(
            dimension_semantics=("parallel",)),
    )(x)


# ----------------------------- reference & test ------------------------------


def _ref_vector_pad(x, target_dim):
    """Pure-JAX reference matching the PyTorch forward."""
    f = x.shape[1]
    if f < target_dim:
        return jnp.pad(x, ((0, 0), (0, target_dim - f)))
    elif f > target_dim:
        return x[:, :target_dim]
    return x


if __name__ == "__main__":
    key = jax.random.PRNGKey(0)

    # Small shapes consistent with the module: (batch=8, features=32).
    n, f = 8, 32
    x = jax.random.normal(key, (n, f), dtype=jnp.float32)

    # Case 1: pad (F < target_dim).
    y_pad = jax.block_until_ready(vector_pad(x, 48))
    assert y_pad.shape == (n, 48)
    assert jnp.allclose(y_pad, _ref_vector_pad(x, 48))

    # Case 2: truncate, non-lane-aligned target (in-vreg slice path).
    y_trunc = jax.block_until_ready(vector_pad(x, 16))
    assert y_trunc.shape == (n, 16)
    assert jnp.allclose(y_trunc, _ref_vector_pad(x, 16))

    # Case 3: identity (F == target_dim) -> no kernel launch.
    y_same = jax.block_until_ready(vector_pad(x, f))
    assert jnp.allclose(y_same, x)

    # Case 4: truncate with lane-aligned target (narrowed input BlockSpec path).
    x2 = jax.random.normal(jax.random.PRNGKey(1), (64, 256), dtype=jnp.float32)
    y2 = jax.block_until_ready(vector_pad(x2, 128))
    assert jnp.allclose(y2, _ref_vector_pad(x2, 128))

    # Case 5: larger N to exercise the tiled grid (grid > 1) pad path.
    x3 = jax.random.normal(jax.random.PRNGKey(2), (4096, 96), dtype=jnp.float32)
    y3 = jax.block_until_ready(vector_pad(x3, 160))
    assert y3.shape == (4096, 160)
    assert jnp.allclose(y3, _ref_vector_pad(x3, 160))

    print("KERNEL_OK")
</pallas_src>

<mosaic_0001>
module attributes {stable_mosaic.version = 11 : i64} {
  func.func @_pad_kernel(%arg0: i32, %arg1: memref<8x32xf32, #tpu.memory_space<vmem>>, %arg2: memref<8x48xf32, #tpu.memory_space<vmem>>) attributes {dimension_semantics = [#tpu.dimension_semantics<parallel>], iteration_bounds = array<i64: 1>, scalar_prefetch = 0 : i64, scratch_operands = 0 : i64, tpu.core_type = #tpu.core_type<tc>, window_params = [{transform_indices = @transform_0, window_bounds = array<i64: 8, 32>}, {transform_indices = @transform_1, window_bounds = array<i64: 8, 48>}]} {
    %cst = arith.constant 0.000000e+00 : f32
    %0 = vector.broadcast %cst : f32 to vector<8x16xf32>
    %c0 = arith.constant 0 : index
    %c0_0 = arith.constant 0 : index
    %1 = vector.load %arg1[%c0, %c0_0] : memref<8x32xf32, #tpu.memory_space<vmem>>, vector<8x32xf32>
    %2 = tpu.concatenate %1, %0 in 1 : vector<8x32xf32>, vector<8x16xf32> -> vector<8x48xf32>
    %c0_1 = arith.constant 0 : index
    %c0_2 = arith.constant 0 : index
    %3 = vector.load %arg2[%c0_1, %c0_2] : memref<8x48xf32, #tpu.memory_space<vmem>>, vector<8x48xf32>
    tpu.vector_store %arg2[%c0_1, %c0_2], %2 {strides = array<i32>} : memref<8x48xf32, #tpu.memory_space<vmem>>, vector<8x48xf32>,
    return
  }
  func.func @transform_0(%arg0: i32) -> (i32, i32) {
    %c0_i32 = arith.constant 0 : i32
    %c0_i32_0 = arith.constant 0 : i32
    return %arg0, %c0_i32 : i32, i32
  }
  func.func @transform_1(%arg0: i32) -> (i32, i32) {
    %c0_i32 = arith.constant 0 : i32
    %c0_i32_0 = arith.constant 0 : i32
    return %arg0, %c0_i32 : i32, i32
  }
}

</mosaic_0001>

<llo_original>
// kernel: tpu_custom_call.1
$region0: #{tpu_custom_call.1}
  #allocation0 [shape = 'u32[]', space=smem, size = 0x4, offset = 0x4, fixed_abs, tag = 'smem constant byte address 0x4 - core index']
  #allocation1 [shape = 'u32[72,128]{1,0:T(1,128)}', space=vmem, size = 0x9000, scoped, tag = 'internal scratch']
  %s0 = inlined_call_operand.hbm [shape: f32[8,32], index: 0, kind: input, shape index: {}]
  %s1 = inlined_call_operand.hbm [shape: f32[8,48], index: 1, kind: output, shape index: {}]
  %s2 = sld [smem:[#allocation0]]
  $region18: #{tpu_custom_call.1} parent=0
    _
  %s4 = ssub.s32 1, %s2
  %s5 = scalar_select 0, %s4, %s2
  $region1: #{tpu_custom_call.1} parent=0
    #allocation2 [shape = 'u8[4096]{0}', space=vmem, size = 0x1000, scoped, tag = 'input window, operand 0, single buffered']
    #allocation3 [shape = 's32[1]{0}', space=sflag, size = 0x4, scoped, tag = 'scoped memory for tpu_custom_call.1']
    #allocation4 [shape = 's32[1]{0}', space=sflag, size = 0x4, scoped, tag = 'scoped memory for tpu_custom_call.1']
    #allocation5 [shape = 'u8[4096]{0}', space=vmem, size = 0x1000, scoped, tag = 'output window, operand 0, single buffered']
    %6 = vsyncpa [#allocation3], 0
    %7 = vsyncpa [#allocation4], 0
    // Predicated region
    $region2: #{tpu_custom_call.1} parent=1 // pred_check
      _
    $region3: #{tpu_custom_call.1} parent=1 // pred_check_branch
      %9 = sbr.rel (0) target = $region5
    $region4: #{tpu_custom_call.1} parent=1 // pred_region
      %11 = vsyncadd [#allocation3], 0
      %s13 = sshll.u32 %s0, 4
      %s14 = int_to_ptr.hbm [resolvable:$true] %s13
      %s15 = sshll.u32 [#allocation2], 4
      %s16 = int_to_ptr.vmem [resolvable:$true] %s15
      %18 = dma.hbm_to_vmem [thread:$0]  %s14, 128, %s16, [#allocation3]
    $region5: #{tpu_custom_call.1} parent=1 // pred_fallthru
      _
    // Predicated region
    $region6: #{tpu_custom_call.1} parent=1 // pred_check
      _
    $region7: #{tpu_custom_call.1} parent=1 // pred_check_branch
      %20 = sbr.rel (0) target = $region9
    $region8: #{tpu_custom_call.1} parent=1 // pred_region
      %22 = dma.done [#allocation3], 128
    $region9: #{tpu_custom_call.1} parent=1 // pred_fallthru
      _
    %v23 = vld [vmem:[#allocation2] sm:$0xff]
    %vm24 = vcmask 261120
    %v25 = vsel %vm24, %v23, 0.0
    %vm26 = vcmask 392192
    %27 = vst.msk [vmem:[#allocation5] sm:$0xff] %vm26, %v25
    // Predicated region
    $region10: #{tpu_custom_call.1} parent=1 // pred_check
      _
    $region11: #{tpu_custom_call.1} parent=1 // pred_check_branch
      %29 = sbr.rel (0) target = $region13
    $region12: #{tpu_custom_call.1} parent=1 // pred_region
      %31 = vsyncadd [#allocation4], 0
      %s33 = sshll.u32 [#allocation5], 4
      %s34 = int_to_ptr.vmem [resolvable:$true] %s33
      %s35 = sshll.u32 %s1, 4
      %s36 = int_to_ptr.hbm [resolvable:$true] %s35
      %38 = dma.vmem_to_hbm [thread:$0]  %s34, 128, %s36, [#allocation4]
    $region13: #{tpu_custom_call.1} parent=1 // pred_fallthru
      _
    // Predicated region
    $region14: #{tpu_custom_call.1} parent=1 // pred_check
      _
    $region15: #{tpu_custom_call.1} parent=1 // pred_check_branch
      %40 = sbr.rel (0) target = $region17
    $region16: #{tpu_custom_call.1} parent=1 // pred_region
      %42 = dma.done [#allocation4], 128
    $region17: #{tpu_custom_call.1} parent=1 // pred_fallthru
      _
    %43 = vsyncpa [#allocation3], 1
    %44 = vsyncpa [#allocation4], 1

</llo_original>
